<compile_context>
chip_gen: v7x
topology: tpu7x:2x2x1
jax: 0.10.0
libtpu: 0.0.40
codegen_flags: <defaults>
</compile_context>

<pallas_src>
import math
import numpy as np
import jax
import jax.numpy as jnp
from jax.experimental import pallas as pl
from jax.experimental.pallas import tpu as pltpu

SHAPE = (5, 5)          # `shape` argument of _MK.__init__ (dim == 2 case)
GROUP = 5               # packed slices fused per kernel row -> lane dim 125
MAX_TB = 8192           # rows per block: 8192 x 128 lanes x 4 B = 4 MiB / buffer
MIN_GRID_STEPS = 4      # keep >= 4 grid steps so v7x's two TCs both get work
_SUBLANE = {4: 8, 2: 16, 1: 32}   # sublane tile multiple, keyed by itemsize


def _make_M_invM(l):
    """Replicates the numpy construction in _MK.__init__ (float64 math)."""
    idx = (np.arange(l) - (l - 1) // 2).astype(np.float64)
    M = np.stack([idx ** i / math.factorial(i) for i in range(l)])
    invM = np.linalg.inv(M)
    return M, invM


def _build_weight(l0, l1, group):
    """W = kron(I_group, kron(invM0, invM1).T), built in float64, cast to f32."""
    _, invM0 = _make_M_invM(l0)
    _, invM1 = _make_M_invM(l1)
    K = np.kron(invM0, invM1)              # (l0*l1, l0*l1), float64
    W = np.kron(np.eye(group), K.T)        # (group*P, group*P), block-diagonal
    return (jnp.asarray(invM0, jnp.float32),
            jnp.asarray(invM1, jnp.float32),
            jnp.asarray(W, jnp.float32))


def _round_up(a, b):
    return -(-a // b) * b


def _mk_kernel(w_ref, x_ref, o_ref):
    # w_ref : resident block-diag Kronecker weight   (GROUP*P, GROUP*P)
    # x_ref : (TB, GROUP*P) slab of packed slices
    # o_ref : (TB, GROUP*P)
    o_ref[...] = jnp.dot(
        x_ref[...], w_ref[...],
        preferred_element_type=jnp.float32).astype(o_ref.dtype)


def mk_forward(x, W):
    """Pallas version of _MK.forward for a 2-D `shape` (dim == 2)."""
    # TODO(synk): only dim == 2 (the common PDE-Net use) is implemented; a
    # general N-mode product would need one Kronecker factor per trailing axis.
    L0, L1 = SHAPE
    P = L0 * L1
    assert x.shape[-2:] == (L0, L1)
    orig_shape = x.shape

    xf = x.reshape((-1, P))                 # _packdim + flatten (free reshape)
    N = xf.shape[0]

    # Pad only up to a multiple of GROUP (needed for the 125-lane reshape);
    # no padding to the tile size -- Pallas masks the partial final block.
    rows = -(-N // GROUP)
    n_pad = rows * GROUP - N
    if n_pad:
        xf = jnp.concatenate([xf, jnp.zeros((n_pad, P), xf.dtype)], axis=0)
    xg = xf.reshape((rows, GROUP * P))      # row-major view, no data movement

    itemsize = jnp.dtype(x.dtype).itemsize
    sub = _SUBLANE[itemsize]                # dtype-correct sublane multiple
    TB = max(sub, min(MAX_TB, _round_up(-(-rows // MIN_GRID_STEPS), sub)))
    grid = (pl.cdiv(rows, TB),)

    cost = pl.CostEstimate(
        flops=2 * rows * (GROUP * P) * (GROUP * P),
        transcendentals=0,
        bytes_accessed=2 * rows * GROUP * P * itemsize + int(W.size) * 4,
    )

    out = pl.pallas_call(
        _mk_kernel,
        out_shape=jax.ShapeDtypeStruct((rows, GROUP * P), x.dtype),
        grid=grid,
        in_specs=[
            pl.BlockSpec((GROUP * P, GROUP * P), lambda n: (0, 0)),  # weight, resident
            pl.BlockSpec((TB, GROUP * P), lambda n: (n, 0)),         # activations
        ],
        out_specs=pl.BlockSpec((TB, GROUP * P), lambda n: (n, 0)),
        compiler_params=pltpu.CompilerParams(
            dimension_semantics=("parallel",),      # v7x: 2 TCs split the batch
            vmem_limit_bytes=32 * 1024 * 1024,      # v5e default (16 MiB) too small
        ),
        cost_estimate=cost,
    )(W, xg)

    out = out.reshape((rows * GROUP, P))
    if n_pad:
        out = out[:N]                       # only when N % GROUP != 0
    return out.reshape(orig_shape)


if __name__ == "__main__":
    L0, L1 = SHAPE
    invM0, invM1, W = _build_weight(L0, L1, GROUP)   # hoisted out of forward

    key = jax.random.PRNGKey(0)
    x = jax.random.normal(key, (2, 4, 16, L0, L1), dtype=jnp.float32)

    out = jax.block_until_ready(mk_forward(x, W))

    # plain-JAX reference of the same multi-mode product
    ref = jnp.einsum("ip,jq,...pq->...ij", invM0, invM1, x)
    assert out.shape == x.shape
    assert jnp.allclose(out, ref, atol=1e-4, rtol=1e-4), "mismatch vs reference"

    print("KERNEL_OK")
</pallas_src>

<mosaic_0001>
module attributes {stable_mosaic.version = 11 : i64} {
  func.func @_mk_kernel(%arg0: i32, %arg1: memref<125x125xf32, #tpu.memory_space<vmem>>, %arg2: memref<8x125xf32, #tpu.memory_space<vmem>>, %arg3: memref<8x125xf32, #tpu.memory_space<vmem>>) attributes {dimension_semantics = [#tpu.dimension_semantics<parallel>], iteration_bounds = array<i64: 4>, scalar_prefetch = 0 : i64, scratch_operands = 0 : i64, tpu.core_type = #tpu.core_type<tc>, window_params = [{pipeline_mode = #tpu.pipeline_mode<synchronous>, transform_indices = @transform_0, window_bounds = array<i64: 125, 125>}, {transform_indices = @transform_1, window_bounds = array<i64: 8, 125>}, {transform_indices = @transform_2, window_bounds = array<i64: 8, 125>}]} {
    %c0 = arith.constant 0 : index
    %c0_0 = arith.constant 0 : index
    %0 = vector.load %arg2[%c0, %c0_0] : memref<8x125xf32, #tpu.memory_space<vmem>>, vector<8x125xf32>
    %c0_1 = arith.constant 0 : index
    %c0_2 = arith.constant 0 : index
    %1 = vector.load %arg1[%c0_1, %c0_2] : memref<125x125xf32, #tpu.memory_space<vmem>>, vector<125x125xf32>
    %cst = arith.constant dense<0.000000e+00> : vector<8x125xf32>
    %2 = tpu.matmul %0, %1, %cst {dimension_numbers = #tpu.dot_dimension_numbers<[1], [0], [0], [1], [0, 0, 1, 1], [], []>} : vector<8x125xf32>, vector<125x125xf32>, vector<8x125xf32> -> vector<8x125xf32>
    %c0_3 = arith.constant 0 : index
    %c0_4 = arith.constant 0 : index
    %3 = vector.load %arg3[%c0_3, %c0_4] : memref<8x125xf32, #tpu.memory_space<vmem>>, vector<8x125xf32>
    tpu.vector_store %arg3[%c0_3, %c0_4], %2 {strides = array<i32>} : memref<8x125xf32, #tpu.memory_space<vmem>>, vector<8x125xf32>,
    return
  }
  func.func @transform_0(%arg0: i32) -> (i32, i32) {
    %c0_i32 = arith.constant 0 : i32
    %c0_i32_0 = arith.constant 0 : i32
    %c0_i32_1 = arith.constant 0 : i32
    return %c0_i32, %c0_i32_0 : i32, i32
  }
  func.func @transform_1(%arg0: i32) -> (i32, i32) {
    %c0_i32 = arith.constant 0 : i32
    %c0_i32_0 = arith.constant 0 : i32
    return %arg0, %c0_i32 : i32, i32
  }
  func.func @transform_2(%arg0: i32) -> (i32, i32) {
    %c0_i32 = arith.constant 0 : i32
    %c0_i32_0 = arith.constant 0 : i32
    return %arg0, %c0_i32 : i32, i32
  }
}

</mosaic_0001>

<llo_original>
// kernel: tpu_custom_call.1
$region0: #{tpu_custom_call.1}
  #allocation0 [shape = 'u32[]', space=smem, size = 0x4, offset = 0x4, fixed_abs, tag = 'smem constant byte address 0x4 - core index']
  #allocation1 [shape = 'u32[144,128]{1,0:T(1,128)}', space=vmem, size = 0x12000, scoped, tag = 'internal scratch']
  %s0 = inlined_call_operand.hbm [shape: f32[125,125], index: 0, kind: input, shape index: {}]
  %s1 = inlined_call_operand.hbm [shape: f32[26,125], index: 1, kind: input, shape index: {}]
  %s2 = inlined_call_operand.hbm [shape: f32[26,125], index: 2, kind: output, shape index: {}]
  %s3 = sld [smem:[#allocation0]]
  $region49: #{tpu_custom_call.1} parent=0
    _
  %s5 = ssub.s32 1, %s3
  %s6 = scalar_select 0, %s5, %s3
  $region1: #{tpu_custom_call.1} parent=0
    #allocation2 [shape = 'u8[65536]{0}', space=vmem, size = 0x10000, scoped, tag = 'input window, operand 0, single buffered']
    #allocation3 [shape = 's32[2]{0}', space=sflag, size = 0x8, scoped, tag = 'scoped memory for tpu_custom_call.1']
    #allocation4 [shape = 's32[2]{0}', space=sflag, size = 0x8, scoped, tag = 'scoped memory for tpu_custom_call.1']
    #allocation5 [shape = 'u8[8192]{0}', space=vmem, size = 0x2000, scoped, tag = 'input window, operand 1']
    #allocation6 [shape = 's32[2]{0}', space=sflag, size = 0x8, scoped, tag = 'scoped memory for tpu_custom_call.1']
    #allocation7 [shape = 'u8[8192]{0}', space=vmem, size = 0x2000, scoped, tag = 'output window, operand 0']
    %7 = vsyncpa [#allocation3], 0
    %8 = vsyncpa [#allocation6], 0
    %s9 = scalar_lea.sflag [#allocation6], 1
    %10 = vsyncpa %s9, 0
    %11 = vsyncpa [#allocation4], 0
    %s12 = scalar_lea.sflag [#allocation4], 1
    %13 = vsyncpa %s12, 0
    loop: start=0, step=1, limit=6
    $region2: #{tpu_custom_call.1} parent=1 // loop_pre_header
      _
    $region3: #{tpu_custom_call.1} parent=1 // loop_header
      %s15 = sphi 0, %s19
      %p16 = scmp.ge.s32.totalorder %s15, 6
      %s23 = sphi 0, %s23
      %s25 = sphi 0, %s23
      %s26 = sphi 0, %s25
      %s40 = sphi 0, %s26
      %s46 = sphi 0, %s48
      %s49 = sphi 0, %s46
      %s50 = sphi 0, %s49
      %s66 = sphi 0, %s50
      %s72 = sphi 0, %s74
      %s75 = sphi 0, %s72
      %s76 = sphi 0, %s75
      %s92 = sphi 0, %s76
    $region4: #{tpu_custom_call.1} parent=1 // loop_header_branch
      %18 = sbr.rel (%p16) target = $region8
    $region5: #{tpu_custom_call.1} parent=1 // loop_body
      %s20 = ssub.s32 %s15, 1
      %s21 = ssub.s32 %s15, 2
      %s22 = sadd.s32 %s15, 1
      %s24 = sadd.s32 %s23, 1
      %p27 = scmp.eq.s32.totalorder %s15, 3
      %p28 = scmp.ne.s32.totalorder %s23, %s25
      %p29 = scmp.eq.s32.totalorder %s15, 0
      %p30 = por %p28, %p29
      %p31 = scmp.ne.s32.totalorder %s23, %s25
      %p32 = scmp.eq.s32.totalorder %s20, 3
      %p33 = por %p31, %p32
      %p34 = scmp.ne.s32.totalorder %s25, %s26
      %p35 = scmp.eq.s32.totalorder %s20, 0
      %p36 = por %p34, %p35
      %p37 = scmp.ne.s32.totalorder %s25, %s26
      %p38 = scmp.eq.s32.totalorder %s21, 3
      %p39 = por %p37, %p38
      %p41 = scmp.ne.s32.totalorder %s26, %s40
      %p42 = scmp.eq.s32.totalorder %s21, 0
      %p43 = por %p41, %p42
      %s44 = ssub.s32 %s15, %s22
      %p45 = scmp.eq.s32.totalorder %s44, 0
      %s47 = sadd.s32 %s46, 1
      %s48 = scalar_select %p45, %s46, %s47
      %p51 = pneg %p45
      %p52 = scmp.eq.s32.totalorder %s15, 3
      %p53 = por %p51, %p52
      %p54 = scmp.ne.s32.totalorder %s46, %s49
      %p55 = scmp.eq.s32.totalorder %s15, 0
      %p56 = por %p54, %p55
      %p57 = scmp.ne.s32.totalorder %s46, %s49
      %p58 = scmp.eq.s32.totalorder %s20, 3
      %p59 = por %p57, %p58
      %p60 = scmp.ne.s32.totalorder %s49, %s50
      %p61 = scmp.eq.s32.totalorder %s20, 0
      %p62 = por %p60, %p61
      %p63 = scmp.ne.s32.totalorder %s49, %s50
      %p64 = scmp.eq.s32.totalorder %s21, 3
      %p65 = por %p63, %p64
      %p67 = scmp.ne.s32.totalorder %s50, %s66
      %p68 = scmp.eq.s32.totalorder %s21, 0
      %p69 = por %p67, %p68
      %s70 = ssub.s32 %s15, %s22
      %p71 = scmp.eq.s32.totalorder %s70, 0
      %s73 = sadd.s32 %s72, 1
      %s74 = scalar_select %p71, %s72, %s73
      %p77 = pneg %p71
      %p78 = scmp.eq.s32.totalorder %s15, 3
      %p79 = por %p77, %p78
      %p80 = scmp.ne.s32.totalorder %s72, %s75
      %p81 = scmp.eq.s32.totalorder %s15, 0
      %p82 = por %p80, %p81
      %p83 = scmp.ne.s32.totalorder %s72, %s75
      %p84 = scmp.eq.s32.totalorder %s20, 3
      %p85 = por %p83, %p84
      %p86 = scmp.ne.s32.totalorder %s75, %s76
      %p87 = scmp.eq.s32.totalorder %s20, 0
      %p88 = por %p86, %p87
      %p89 = scmp.ne.s32.totalorder %s75, %s76
      %p90 = scmp.eq.s32.totalorder %s21, 3
      %p91 = por %p89, %p90
      %p93 = scmp.ne.s32.totalorder %s76, %s92
      %p94 = scmp.eq.s32.totalorder %s21, 0
      %p95 = por %p93, %p94
      %p96 = scmp.le.s32.totalorder 1, %s15
      %p97 = scmp.lt.s32.totalorder %s15, 5
      %p98 = pnand %p96, %p97
      %p99 = pneg %p98
      // Predicated region
      $region9: #{tpu_custom_call.1} parent=5 // pred_check
        _
      $region10: #{tpu_custom_call.1} parent=5 // pred_check_branch
        %101 = sbr.rel (%p98) target = $region12
      $region11: #{tpu_custom_call.1} parent=5 // pred_region
        %s102 = ssub.s32 %s15, 1
        // Predicated region
        $region13: #{tpu_custom_call.1} parent=11 // pred_check
          %p103 = pneg %p36
        $region14: #{tpu_custom_call.1} parent=11 // pred_check_branch
          %105 = sbr.rel (%p103) target = $region16
        $region15: #{tpu_custom_call.1} parent=11 // pred_region
          %s107 = ssub.s32 2048, 2048
          %108 = vsyncadd [#allocation3], %s107
          %s109 = sshll.u32 [#allocation2], 4
          %s110 = int_to_ptr.vmem [resolvable:$true] %s109
          %115 = dma.hbm_to_vmem [thread:$0]  %s0, 2048, %s110, [#allocation3], 128, 128, 8
        $region16: #{tpu_custom_call.1} parent=11 // pred_fallthru
          _
      $region12: #{tpu_custom_call.1} parent=5 // pred_fallthru
        _
      %p116 = scmp.lt.s32.totalorder %s15, 4
      // Predicated region
      $region17: #{tpu_custom_call.1} parent=5 // pred_check
        %p117 = pneg %p116
      $region18: #{tpu_custom_call.1} parent=5 // pred_check_branch
        %119 = sbr.rel (%p117) target = $region20
      $region19: #{tpu_custom_call.1} parent=5 // pred_region
        // Predicated region
        $region21: #{tpu_custom_call.1} parent=19 // pred_check
          %p120 = pneg %p56
        $region22: #{tpu_custom_call.1} parent=19 // pred_check_branch
          %122 = sbr.rel (%p120) target = $region24
        $region23: #{tpu_custom_call.1} parent=19 // pred_region
          %s123 = sand.u32 %s46, 1
          %s124 = scalar_lea.sflag [#allocation6], %s123
          %s125 = sand.u32 %s46, 1
          %s126 = smul.addr %s125, 8
          %s127 = scalar_lea.vmem [#allocation5], %s126
          %s129 = ssub.s32 128, 128
          %130 = vsyncadd %s124, %s129
          %s131 = smul.addr %s15, 128
          %s132 = scalar_lea.hbm %s1, %s131
          %s134 = sshll.u32 %s127, 4
          %s135 = int_to_ptr.vmem [resolvable:$true] %s134
          %137 = dma.hbm_to_vmem [thread:$0]  %s132, 128, %s135, %s124
        $region24: #{tpu_custom_call.1} parent=19 // pred_fallthru
          _
      $region20: #{tpu_custom_call.1} parent=5 // pred_fallthru
        _
      %p138 = scmp.le.s32.totalorder 1, %s15
      %p139 = scmp.lt.s32.totalorder %s15, 5
      %p140 = pnand %p138, %p139
      %p141 = pneg %p140
      // Predicated region
      $region25: #{tpu_custom_call.1} parent=5 // pred_check
        _
      $region26: #{tpu_custom_call.1} parent=5 // pred_check_branch
        %143 = sbr.rel (%p140) target = $region28
      $region27: #{tpu_custom_call.1} parent=5 // pred_region
        %s144 = ssub.s32 %s15, 1
        // Predicated region
        $region29: #{tpu_custom_call.1} parent=27 // pred_check
          %p145 = pneg %p36
        $region30: #{tpu_custom_call.1} parent=27 // pred_check_branch
          %147 = sbr.rel (%p145) target = $region32
        $region31: #{tpu_custom_call.1} parent=27 // pred_region
          %148 = dma.done [#allocation3], 2048
        $region32: #{tpu_custom_call.1} parent=27 // pred_fallthru
          _
        %s149 = sand.u32 %s49, 1
        %s150 = scalar_lea.sflag [#allocation6], %s149
        %s151 = sand.u32 %s49, 1
        %s152 = smul.addr %s151, 8
        %s153 = scalar_lea.vmem [#allocation5], %s152
        // Predicated region
        $region33: #{tpu_custom_call.1} parent=27 // pred_check
          %p154 = pneg %p62
        $region34: #{tpu_custom_call.1} parent=27 // pred_check_branch
          %156 = sbr.rel (%p154) target = $region36
        $region35: #{tpu_custom_call.1} parent=27 // pred_region
          %157 = dma.done %s150, 128
        $region36: #{tpu_custom_call.1} parent=27 // pred_fallthru
          _
        %p158 = pneg %p36
        %p159 = pneg %p33
        %s160 = sand.u32 %s49, 1
        %s161 = scalar_lea.sflag [#allocation6], %s160
        %s162 = sand.u32 %s49, 1
        %s163 = smul.addr %s162, 8
        %s164 = scalar_lea.vmem [#allocation5], %s163
        %p165 = pneg %p62
        %p166 = pneg %p59
        %p167 = pneg %p88
        %p168 = pneg %p85
        %s169 = sand.u32 %s75, 1
        %s170 = scalar_lea.sflag [#allocation4], %s169
        %s171 = sand.u32 %s75, 1
        %s172 = smul.addr %s171, 8
        %s173 = scalar_lea.vmem [#allocation7], %s172
        %v174 = vld [vmem:[%s153] sm:$0xff]
        %v175 = vld [vmem:[#allocation2] sm:$0xff]
        %v176 = vld [vmem:[#allocation2 + $0x8] sm:$0xff]
        %v177 = vld [vmem:[#allocation2 + $0x10] sm:$0xff]
        %v178 = vld [vmem:[#allocation2 + $0x18] sm:$0xff]
        %v179 = vld [vmem:[#allocation2 + $0x20] sm:$0xff]
        %v180 = vld [vmem:[#allocation2 + $0x28] sm:$0xff]
        %v181 = vld [vmem:[#allocation2 + $0x30] sm:$0xff]
        %v182 = vld [vmem:[#allocation2 + $0x38] sm:$0xff]
        %v183 = vld [vmem:[#allocation2 + $0x40] sm:$0xff]
        %v184 = vld [vmem:[#allocation2 + $0x48] sm:$0xff]
        %v185 = vld [vmem:[#allocation2 + $0x50] sm:$0xff]
        %v186 = vld [vmem:[#allocation2 + $0x58] sm:$0xff]
        %v187 = vld [vmem:[#allocation2 + $0x60] sm:$0xff]
        %v188 = vld [vmem:[#allocation2 + $0x68] sm:$0xff]
        %v189 = vld [vmem:[#allocation2 + $0x70] sm:$0xff]
        %v190 = vld [vmem:[#allocation2 + $0x78] sm:$0x1f]
        %vm191 = vcmask 1022976
        %v193 = vsel %vm191, %v174, 0
        %vm195 = vcmask 1044480
        %v197 = vsel %vm195, %v190, 0
        %199 = vmatprep.subr.mxu0 0.0
        %200 = vmatpush1.msra.mxu0 %v175
        %201 = vmatprep.subr.mxu0 0.0
        %202 = vmatpush1.msra.mxu0 %v176
        %203 = vmatprep.subr.mxu0 0.0
        %204 = vmatpush1.msra.mxu0 %v177
        %205 = vmatprep.subr.mxu0 0.0
        %206 = vmatpush1.msra.mxu0 %v178
        %207 = vmatprep.subr.mxu0 0.0
        %208 = vmatpush1.msra.mxu0 %v179
        %209 = vmatprep.subr.mxu0 0.0
        %210 = vmatpush1.msra.mxu0 %v180
        %211 = vmatprep.subr.mxu0 0.0
        %212 = vmatpush1.msra.mxu0 %v181
        %213 = vmatprep.subr.mxu0 0.0
        %214 = vmatpush1.msra.mxu0 %v182
        %215 = vmatprep.subr.mxu0 0.0
        %216 = vmatpush1.msra.mxu0 %v183
        %217 = vmatprep.subr.mxu0 0.0
        %218 = vmatpush1.msra.mxu0 %v184
        %219 = vmatprep.subr.mxu0 0.0
        %220 = vmatpush1.msra.mxu0 %v185
        %221 = vmatprep.subr.mxu0 0.0
        %222 = vmatpush1.msra.mxu0 %v186
        %223 = vmatprep.subr.mxu0 0.0
        %224 = vmatpush1.msra.mxu0 %v187
        %225 = vmatprep.subr.mxu0 0.0
        %226 = vmatpush1.msra.mxu0 %v188
        %227 = vmatprep.subr.mxu0 0.0
        %228 = vmatpush1.msra.mxu0 %v189
        %229 = vmatprep.subr.mxu0 0.0
        %230 = vmatpush1.msra.mxu0 %v197
        %231 = vmatprep.subr.mxu0 0.0
        %232 = vmatpush1.msra.mxu0 0.0
        %233 = vmatprep.subr.mxu0 0.0
        %234 = vmatpush1.msra.mxu0 0.0
        %235 = vmatprep.subr.mxu0 0.0
        %236 = vmatpush1.msra.mxu0 0.0
        %237 = vmatprep.subr.mxu0 0.0
        %238 = vmatpush1.msra.mxu0 0.0
        %239 = vmatprep.subr.mxu0 0.0
        %240 = vmatpush1.msra.mxu0 0.0
        %241 = vmatprep.subr.mxu0 0.0
        %242 = vmatpush1.msra.mxu0 0.0
        %243 = vmatprep.subr.mxu0 0.0
        %244 = vmatpush1.msra.mxu0 0.0
        %245 = vmatprep.subr.mxu0 0.0
        %246 = vmatpush1.msra.mxu0 0.0
        %247 = vmatprep.subr.mxu0 0.0
        %248 = vmatpush1.msra.mxu0 0.0
        %249 = vmatprep.subr.mxu0 0.0
        %250 = vmatpush1.msra.mxu0 0.0
        %251 = vmatprep.subr.mxu0 0.0
        %252 = vmatpush1.msra.mxu0 0.0
        %253 = vmatprep.subr.mxu0 0.0
        %254 = vmatpush1.msra.mxu0 0.0
        %255 = vmatprep.subr.mxu0 0.0
        %256 = vmatpush1.msra.mxu0 0.0
        %257 = vmatprep.subr.mxu0 0.0
        %258 = vmatpush1.msra.mxu0 0.0
        %259 = vmatprep.subr.mxu0 0.0
        %260 = vmatpush1.msra.mxu0 0.0
        %261 = vmatprep.subr.mxu0 0.0
        %262 = vmatpush1.msra.mxu0 0.0
        %263 = vmatprep.mubr.f32.mxu0 0.0
        %264 = vmatmul.mubr.f32.gmra.mrb[0].mxu0 %v193
        %v265 = vpop.f32.mrb[0].mxu0
        %v266 = vadd.f32 0.0, %v265
        %v267 = vpop.f32.mrb[0].mxu0
        %268 = vdwg.mxu0
        %269 = vst.msk [vmem:[%s173] sm:$0xff] %vm191, %v266
        %s270 = sand.u32 %s75, 1
        %s271 = scalar_lea.sflag [#allocation4], %s270
        %s272 = sand.u32 %s75, 1
        %s273 = smul.addr %s272, 8
        %s274 = scalar_lea.vmem [#allocation7], %s273
        // Predicated region
        $region37: #{tpu_custom_call.1} parent=27 // pred_check
          %p275 = pneg %p85
        $region38: #{tpu_custom_call.1} parent=27 // pred_check_branch
          %277 = sbr.rel (%p275) target = $region40
        $region39: #{tpu_custom_call.1} parent=27 // pred_region
          %s279 = ssub.s32 128, 128
          %280 = vsyncadd %s271, %s279
          %s281 = smul.addr %s20, 128
          %s282 = scalar_lea.hbm %s2, %s281
          %s284 = sshll.u32 %s274, 4
          %s285 = int_to_ptr.vmem [resolvable:$true] %s284
          %287 = dma.vmem_to_hbm [thread:$0]  %s285, 128, %s282, %s271
        $region40: #{tpu_custom_call.1} parent=27 // pred_fallthru
          _
      $region28: #{tpu_custom_call.1} parent=5 // pred_fallthru
        _
      %p288 = scmp.le.s32.totalorder 2, %s15
      // Predicated region
      $region41: #{tpu_custom_call.1} parent=5 // pred_check
        %p289 = pneg %p288
      $region42: #{tpu_custom_call.1} parent=5 // pred_check_branch
        %291 = sbr.rel (%p289) target = $region44
      $region43: #{tpu_custom_call.1} parent=5 // pred_region
        %s292 = ssub.s32 %s15, 2
        // Predicated region
        $region45: #{tpu_custom_call.1} parent=43 // pred_check
          %p293 = pneg %p91
        $region46: #{tpu_custom_call.1} parent=43 // pred_check_branch
          %295 = sbr.rel (%p293) target = $region48
        $region47: #{tpu_custom_call.1} parent=43 // pred_region
          %s296 = sand.u32 %s76, 1
          %s297 = scalar_lea.sflag [#allocation4], %s296
          %s298 = sand.u32 %s76, 1
          %s299 = smul.addr %s298, 8
          %s300 = scalar_lea.vmem [#allocation7], %s299
          %301 = dma.done %s297, 128
        $region48: #{tpu_custom_call.1} parent=43 // pred_fallthru
          _
      $region44: #{tpu_custom_call.1} parent=5 // pred_fallthru
        _
    $region6: #{tpu_custom_call.1} parent=1 // loop_footer
      %s19 = sadd.s32 1, %s15
    $region7: #{tpu_custom_call.1} parent=1 // loop_footer_branch
      %14 = sbr.rel target = $region3
    $region8: #{tpu_custom_call.1} parent=1 // loop_exit
      _
    %302 = vsyncpa [#allocation3], 1
    %s303 = scalar_lea.sflag [#allocation3], 1
    %304 = vsyncpa %s303, 1
    %305 = vsyncpa [#allocation6], 1
    %s306 = scalar_lea.sflag [#allocation6], 1
    %307 = vsyncpa %s306, 1
    %308 = vsyncpa [#allocation4], 1
    %s309 = scalar_lea.sflag [#allocation4], 1
    %310 = vsyncpa %s309, 1

</llo_original>
